<compile_context>
chip_gen: v6e
topology: v6e:2x2x1
jax: 0.10.0
libtpu: 0.0.40
codegen_flags: <defaults>
</compile_context>

<pallas_src>
import jax
import jax.numpy as jnp
from jax.experimental import pallas as pl
from jax.experimental.pallas import tpu as pltpu


def lstm_kernel(x_ref, wx_ref, b_ref, wh_ref, wp_ref, bp_ref, out_ref):
    B, T = x_ref.shape
    H4 = wh_ref.shape[1]            # 4 * hidden_dim (one lane tile when H = 32)
    H = H4 // 4

    wx = wx_ref[...]                # (1, 4H) f32   input -> gate weights
    b = b_ref[...]                  # (1, 4H) f32   fused bias (bx + bh)
    wh = wh_ref[...]                # (H, 4H) bf16  hidden -> gate weights
    x = x_ref[...]                  # (B, T)  f32   one vreg, read once

    def sigmoid(z):                 # EUP-only sigmoid (tanh identity, no divide)
        return 0.5 * jnp.tanh(0.5 * z) + 0.5

    h = jnp.zeros((B, H), jnp.float32)
    c = jnp.zeros((B, H), jnp.float32)

    # T is small & static: full unroll gives the LLO scheduler cross-step
    # visibility so the off-chain VPU work of step t overlaps the MXU dot of
    # step t-1.  Only the (B,H)x(H,4H) bf16 dot sits on the recurrence chain.
    for t in range(T):
        # Input contribution: rank-1 broadcast multiply (VPU), off the h-chain.
        xc = x[:, t:t + 1] * wx + b                                   # (B, 4H)
        z = xc + jnp.dot(h.astype(jnp.bfloat16), wh,
                         preferred_element_type=jnp.float32)          # (B, 4H)
        g = jnp.tanh(z[:, 0 * H:1 * H])
        i = sigmoid(z[:, 1 * H:2 * H])
        f = sigmoid(z[:, 2 * H:3 * H])
        o = sigmoid(z[:, 3 * H:4 * H])
        c = g * i + c * f
        h = jnp.tanh(c) * o

    out_ref[...] = (jnp.dot(h.astype(jnp.bfloat16), wp_ref[...],
                            preferred_element_type=jnp.float32)
                    + bp_ref[...])


def pack_params(params):
    """One-time layout/precision packing for the kernel (outside the per-call path)."""
    return dict(
        wx=params["wxT"].astype(jnp.float32),                  # (1, 4H) f32
        b=(params["bx"] + params["bh"]).astype(jnp.float32),   # (1, 4H) f32 fused
        wh=params["whT"].astype(jnp.bfloat16),                 # (H, 4H) bf16
        wp=params["wpT"].astype(jnp.bfloat16),                 # (H, O)  bf16
        bp=params["bp"].astype(jnp.float32),                   # (1, O)  f32
    )


def lstm_forward(x, packed):
    """x: (B, T) float32 -> (B, output_dim) float32."""
    B, T = x.shape
    H, H4 = packed["wh"].shape
    O = packed["wp"].shape[1]

    def full_spec(shape):
        return pl.BlockSpec(shape, lambda i, shape=shape: (0,) * len(shape))

    return pl.pallas_call(
        lstm_kernel,
        grid=(1,),
        out_shape=jax.ShapeDtypeStruct((B, O), jnp.float32),
        in_specs=[
            full_spec((B, T)),        # x
            full_spec((1, H4)),       # wx  packed [g, i, f, o]
            full_spec((1, H4)),       # fused bias bx + bh
            full_spec((H, H4)),       # wh  packed [g, i, f, o] (bf16)
            full_spec((H, O)),        # wp  (bf16)
            full_spec((1, O)),        # bp
        ],
        out_specs=full_spec((B, O)),
        compiler_params=pltpu.CompilerParams(
            dimension_semantics=("arbitrary",)),
    )(x.astype(jnp.float32), packed["wx"], packed["b"], packed["wh"],
      packed["wp"], packed["bp"])


def init_params(key, input_dim, hidden_dim, output_dim):
    """Deterministic init mimicking nn.Linear's U(-1/sqrt(fan_in), 1/sqrt(fan_in))."""
    def linear(k, fan_in, fan_out):
        kw, kb = jax.random.split(k)
        bound = 1.0 / jnp.sqrt(jnp.float32(fan_in))
        w = jax.random.uniform(kw, (fan_out, fan_in), jnp.float32, -bound, bound)
        b = jax.random.uniform(kb, (fan_out,), jnp.float32, -bound, bound)
        return w, b

    keys = jax.random.split(key, 9)
    # gate order packed along last axis: [g, i, f, o]
    W_gx, b_gx = linear(keys[0], input_dim, hidden_dim)
    W_ix, b_ix = linear(keys[1], input_dim, hidden_dim)
    W_fx, b_fx = linear(keys[2], input_dim, hidden_dim)
    W_ox, b_ox = linear(keys[3], input_dim, hidden_dim)
    W_gh, b_gh = linear(keys[4], hidden_dim, hidden_dim)
    W_ih, b_ih = linear(keys[5], hidden_dim, hidden_dim)
    W_fh, b_fh = linear(keys[6], hidden_dim, hidden_dim)
    W_oh, b_oh = linear(keys[7], hidden_dim, hidden_dim)
    W_ph, b_ph = linear(keys[8], hidden_dim, output_dim)

    wxT = jnp.concatenate([W_gx.T, W_ix.T, W_fx.T, W_ox.T], axis=1)  # (input_dim, 4H)
    whT = jnp.concatenate([W_gh.T, W_ih.T, W_fh.T, W_oh.T], axis=1)  # (H, 4H)
    bx = jnp.concatenate([b_gx, b_ix, b_fx, b_ox])[None, :]          # (1, 4H)
    bh = jnp.concatenate([b_gh, b_ih, b_fh, b_oh])[None, :]          # (1, 4H)
    wpT = W_ph.T                                                     # (H, O)
    bp = b_ph[None, :]                                               # (1, O)
    return dict(wxT=wxT, whT=whT, bx=bx, bh=bh, wpT=wpT, bp=bp)


def ref_forward(x, p):
    """Pure-JAX f32 reference mirroring the PyTorch forward exactly."""
    B, T = x.shape
    H = p["whT"].shape[0]
    h = jnp.zeros((B, H), jnp.float32)
    c = jnp.zeros((B, H), jnp.float32)
    for t in range(T):
        xi = x[:, t:t + 1]
        z = xi @ p["wxT"] + p["bx"] + h @ p["whT"] + p["bh"]
        g = jnp.tanh(z[:, :H])
        i = jax.nn.sigmoid(z[:, H:2 * H])
        f = jax.nn.sigmoid(z[:, 2 * H:3 * H])
        o = jax.nn.sigmoid(z[:, 3 * H:])
        c = g * i + c * f
        h = jnp.tanh(c) * o
    return h @ p["wpT"] + p["bp"]


def ref_forward_mixed(x, packed):
    """Pure-JAX reference with the same mixed precision / gate math as the kernel."""
    B, T = x.shape
    H = packed["wh"].shape[0]
    sig = lambda z: 0.5 * jnp.tanh(0.5 * z) + 0.5
    h = jnp.zeros((B, H), jnp.float32)
    c = jnp.zeros((B, H), jnp.float32)
    for t in range(T):
        xc = x[:, t:t + 1] * packed["wx"] + packed["b"]
        z = xc + jnp.dot(h.astype(jnp.bfloat16), packed["wh"],
                         preferred_element_type=jnp.float32)
        g = jnp.tanh(z[:, :H])
        i = sig(z[:, H:2 * H])
        f = sig(z[:, 2 * H:3 * H])
        o = sig(z[:, 3 * H:])
        c = g * i + c * f
        h = jnp.tanh(c) * o
    return (jnp.dot(h.astype(jnp.bfloat16), packed["wp"],
                    preferred_element_type=jnp.float32) + packed["bp"])


if __name__ == "__main__":
    batch = 2
    seq_length = 8
    input_dim = 1          # forced by x[:, i].unsqueeze(-1) in the PyTorch forward
    hidden_dim = 32
    output_dim = 10

    key = jax.random.PRNGKey(0)
    k_x, k_p = jax.random.split(key)
    x = jax.random.normal(k_x, (batch, seq_length), jnp.float32)
    params = init_params(k_p, input_dim, hidden_dim, output_dim)
    packed = pack_params(params)     # one-time packing, outside the forward path

    out = jax.jit(lstm_forward)(x, packed)
    out = jax.block_until_ready(out)
    assert out.shape == (batch, output_dim)

    # Tight check against a pure-JAX reference using the same mixed precision.
    exp_mixed = ref_forward_mixed(x, packed)
    err_mixed = float(jnp.max(jnp.abs(out - exp_mixed)))
    assert jnp.allclose(out, exp_mixed, atol=5e-3, rtol=5e-3), (
        f"mismatch vs mixed-precision reference (max abs err {err_mixed})")

    # Envelope check against the full-f32 (PyTorch-faithful) reference; the
    # bf16 MXU inputs bound the deviation to ~1e-2.
    exp_f32 = ref_forward(x, params)
    err_f32 = float(jnp.max(jnp.abs(out - exp_f32)))
    assert jnp.allclose(out, exp_f32, atol=5e-2, rtol=5e-2), (
        f"mismatch vs f32 reference (max abs err {err_f32})")

    print("KERNEL_OK")
</pallas_src>

<mosaic_0001>
module attributes {stable_mosaic.version = 11 : i64} {
  func.func @lstm_kernel(%arg0: i32, %arg1: memref<2x8xf32, #tpu.memory_space<vmem>>, %arg2: memref<1x128xf32, #tpu.memory_space<vmem>>, %arg3: memref<1x128xf32, #tpu.memory_space<vmem>>, %arg4: memref<32x128xbf16, #tpu.memory_space<vmem>>, %arg5: memref<32x10xbf16, #tpu.memory_space<vmem>>, %arg6: memref<1x10xf32, #tpu.memory_space<vmem>>, %arg7: memref<2x10xf32, #tpu.memory_space<vmem>>) attributes {dimension_semantics = [#tpu.dimension_semantics<arbitrary>], iteration_bounds = array<i64: 1>, scalar_prefetch = 0 : i64, scratch_operands = 0 : i64, tpu.core_type = #tpu.core_type<tc>, window_params = [{pipeline_mode = #tpu.pipeline_mode<synchronous>, transform_indices = @transform_0, window_bounds = array<i64: 2, 8>}, {pipeline_mode = #tpu.pipeline_mode<synchronous>, transform_indices = @transform_1, window_bounds = array<i64: 1, 128>}, {pipeline_mode = #tpu.pipeline_mode<synchronous>, transform_indices = @transform_2, window_bounds = array<i64: 1, 128>}, {pipeline_mode = #tpu.pipeline_mode<synchronous>, transform_indices = @transform_3, window_bounds = array<i64: 32, 128>}, {pipeline_mode = #tpu.pipeline_mode<synchronous>, transform_indices = @transform_4, window_bounds = array<i64: 32, 10>}, {pipeline_mode = #tpu.pipeline_mode<synchronous>, transform_indices = @transform_5, window_bounds = array<i64: 1, 10>}, {pipeline_mode = #tpu.pipeline_mode<synchronous>, transform_indices = @transform_6, window_bounds = array<i64: 2, 10>}]} {
    %c0 = arith.constant 0 : index
    %c0_0 = arith.constant 0 : index
    %0 = vector.load %arg2[%c0, %c0_0] : memref<1x128xf32, #tpu.memory_space<vmem>>, vector<1x128xf32>
    %c0_1 = arith.constant 0 : index
    %c0_2 = arith.constant 0 : index
    %1 = vector.load %arg3[%c0_1, %c0_2] : memref<1x128xf32, #tpu.memory_space<vmem>>, vector<1x128xf32>
    %c0_3 = arith.constant 0 : index
    %c0_4 = arith.constant 0 : index
    %2 = vector.load %arg4[%c0_3, %c0_4] : memref<32x128xbf16, #tpu.memory_space<vmem>>, vector<32x128xbf16>
    %c0_5 = arith.constant 0 : index
    %c0_6 = arith.constant 0 : index
    %3 = vector.load %arg1[%c0_5, %c0_6] : memref<2x8xf32, #tpu.memory_space<vmem>>, vector<2x8xf32>
    %cst = arith.constant 0.000000e+00 : f32
    %4 = vector.broadcast %cst : f32 to vector<2x32xf32>
    %cst_7 = arith.constant 0.000000e+00 : f32
    %5 = vector.broadcast %cst_7 : f32 to vector<2x32xf32>
    %6 = vector.extract_strided_slice %3 {offsets = [0, 0], sizes = [2, 1], strides = [1, 1]} : vector<2x8xf32> to vector<2x1xf32>
    %7 = vector.broadcast %6 : vector<2x1xf32> to vector<2x128xf32>
    %8 = vector.broadcast %0 : vector<1x128xf32> to vector<2x128xf32>
    %9 = arith.mulf %7, %8 : vector<2x128xf32>
    %10 = vector.broadcast %1 : vector<1x128xf32> to vector<2x128xf32>
    %11 = arith.addf %9, %10 : vector<2x128xf32>
    %12 = arith.truncf %4 : vector<2x32xf32> to vector<2x32xbf16>
    %cst_8 = arith.constant dense<0.000000e+00> : vector<2x128xf32>
    %13 = tpu.matmul %12, %2, %cst_8 {dimension_numbers = #tpu.dot_dimension_numbers<[1], [0], [0], [1], [0, 0, 1, 1], [], []>} : vector<2x32xbf16>, vector<32x128xbf16>, vector<2x128xf32> -> vector<2x128xf32>
    %14 = arith.addf %11, %13 : vector<2x128xf32>
    %15 = vector.extract_strided_slice %14 {offsets = [0, 0], sizes = [2, 32], strides = [1, 1]} : vector<2x128xf32> to vector<2x32xf32>
    %16 = math.tanh %15 : vector<2x32xf32>
    %17 = vector.extract_strided_slice %14 {offsets = [0, 32], sizes = [2, 32], strides = [1, 1]} : vector<2x128xf32> to vector<2x32xf32>
    %cst_9 = arith.constant 5.000000e-01 : f32
    %18 = vector.broadcast %cst_9 : f32 to vector<2x32xf32>
    %19 = arith.mulf %18, %17 : vector<2x32xf32>
    %20 = math.tanh %19 : vector<2x32xf32>
    %cst_10 = arith.constant 5.000000e-01 : f32
    %21 = vector.broadcast %cst_10 : f32 to vector<2x32xf32>
    %22 = arith.mulf %21, %20 : vector<2x32xf32>
    %cst_11 = arith.constant 5.000000e-01 : f32
    %23 = vector.broadcast %cst_11 : f32 to vector<2x32xf32>
    %24 = arith.addf %22, %23 : vector<2x32xf32>
    %25 = vector.extract_strided_slice %14 {offsets = [0, 64], sizes = [2, 32], strides = [1, 1]} : vector<2x128xf32> to vector<2x32xf32>
    %cst_12 = arith.constant 5.000000e-01 : f32
    %26 = vector.broadcast %cst_12 : f32 to vector<2x32xf32>
    %27 = arith.mulf %26, %25 : vector<2x32xf32>
    %28 = math.tanh %27 : vector<2x32xf32>
    %cst_13 = arith.constant 5.000000e-01 : f32
    %29 = vector.broadcast %cst_13 : f32 to vector<2x32xf32>
    %30 = arith.mulf %29, %28 : vector<2x32xf32>
    %cst_14 = arith.constant 5.000000e-01 : f32
    %31 = vector.broadcast %cst_14 : f32 to vector<2x32xf32>
    %32 = arith.addf %30, %31 : vector<2x32xf32>
    %33 = vector.extract_strided_slice %14 {offsets = [0, 96], sizes = [2, 32], strides = [1, 1]} : vector<2x128xf32> to vector<2x32xf32>
    %cst_15 = arith.constant 5.000000e-01 : f32
    %34 = vector.broadcast %cst_15 : f32 to vector<2x32xf32>
    %35 = arith.mulf %34, %33 : vector<2x32xf32>
    %36 = math.tanh %35 : vector<2x32xf32>
    %cst_16 = arith.constant 5.000000e-01 : f32
    %37 = vector.broadcast %cst_16 : f32 to vector<2x32xf32>
    %38 = arith.mulf %37, %36 : vector<2x32xf32>
    %cst_17 = arith.constant 5.000000e-01 : f32
    %39 = vector.broadcast %cst_17 : f32 to vector<2x32xf32>
    %40 = arith.addf %38, %39 : vector<2x32xf32>
    %41 = arith.mulf %16, %24 : vector<2x32xf32>
    %42 = arith.mulf %5, %32 : vector<2x32xf32>
    %43 = arith.addf %41, %42 : vector<2x32xf32>
    %44 = math.tanh %43 : vector<2x32xf32>
    %45 = arith.mulf %44, %40 : vector<2x32xf32>
    %46 = vector.extract_strided_slice %3 {offsets = [0, 1], sizes = [2, 1], strides = [1, 1]} : vector<2x8xf32> to vector<2x1xf32>
    %47 = vector.broadcast %46 : vector<2x1xf32> to vector<2x128xf32>
    %48 = vector.broadcast %0 : vector<1x128xf32> to vector<2x128xf32>
    %49 = arith.mulf %47, %48 : vector<2x128xf32>
    %50 = vector.broadcast %1 : vector<1x128xf32> to vector<2x128xf32>
    %51 = arith.addf %49, %50 : vector<2x128xf32>
    %52 = arith.truncf %45 : vector<2x32xf32> to vector<2x32xbf16>
    %cst_18 = arith.constant dense<0.000000e+00> : vector<2x128xf32>
    %53 = tpu.matmul %52, %2, %cst_18 {dimension_numbers = #tpu.dot_dimension_numbers<[1], [0], [0], [1], [0, 0, 1, 1], [], []>} : vector<2x32xbf16>, vector<32x128xbf16>, vector<2x128xf32> -> vector<2x128xf32>
    %54 = arith.addf %51, %53 : vector<2x128xf32>
    %55 = vector.extract_strided_slice %54 {offsets = [0, 0], sizes = [2, 32], strides = [1, 1]} : vector<2x128xf32> to vector<2x32xf32>
    %56 = math.tanh %55 : vector<2x32xf32>
    %57 = vector.extract_strided_slice %54 {offsets = [0, 32], sizes = [2, 32], strides = [1, 1]} : vector<2x128xf32> to vector<2x32xf32>
    %cst_19 = arith.constant 5.000000e-01 : f32
    %58 = vector.broadcast %cst_19 : f32 to vector<2x32xf32>
    %59 = arith.mulf %58, %57 : vector<2x32xf32>
    %60 = math.tanh %59 : vector<2x32xf32>
    %cst_20 = arith.constant 5.000000e-01 : f32
    %61 = vector.broadcast %cst_20 : f32 to vector<2x32xf32>
    %62 = arith.mulf %61, %60 : vector<2x32xf32>
    %cst_21 = arith.constant 5.000000e-01 : f32
    %63 = vector.broadcast %cst_21 : f32 to vector<2x32xf32>
    %64 = arith.addf %62, %63 : vector<2x32xf32>
    %65 = vector.extract_strided_slice %54 {offsets = [0, 64], sizes = [2, 32], strides = [1, 1]} : vector<2x128xf32> to vector<2x32xf32>
    %cst_22 = arith.constant 5.000000e-01 : f32
    %66 = vector.broadcast %cst_22 : f32 to vector<2x32xf32>
    %67 = arith.mulf %66, %65 : vector<2x32xf32>
    %68 = math.tanh %67 : vector<2x32xf32>
    %cst_23 = arith.constant 5.000000e-01 : f32
    %69 = vector.broadcast %cst_23 : f32 to vector<2x32xf32>
    %70 = arith.mulf %69, %68 : vector<2x32xf32>
    %cst_24 = arith.constant 5.000000e-01 : f32
    %71 = vector.broadcast %cst_24 : f32 to vector<2x32xf32>
    %72 = arith.addf %70, %71 : vector<2x32xf32>
    %73 = vector.extract_strided_slice %54 {offsets = [0, 96], sizes = [2, 32], strides = [1, 1]} : vector<2x128xf32> to vector<2x32xf32>
    %cst_25 = arith.constant 5.000000e-01 : f32
    %74 = vector.broadcast %cst_25 : f32 to vector<2x32xf32>
    %75 = arith.mulf %74, %73 : vector<2x32xf32>
    %76 = math.tanh %75 : vector<2x32xf32>
    %cst_26 = arith.constant 5.000000e-01 : f32
    %77 = vector.broadcast %cst_26 : f32 to vector<2x32xf32>
    %78 = arith.mulf %77, %76 : vector<2x32xf32>
    %cst_27 = arith.constant 5.000000e-01 : f32
    %79 = vector.broadcast %cst_27 : f32 to vector<2x32xf32>
    %80 = arith.addf %78, %79 : vector<2x32xf32>
    %81 = arith.mulf %56, %64 : vector<2x32xf32>
    %82 = arith.mulf %43, %72 : vector<2x32xf32>
    %83 = arith.addf %81, %82 : vector<2x32xf32>
    %84 = math.tanh %83 : vector<2x32xf32>
    %85 = arith.mulf %84, %80 : vector<2x32xf32>
    %86 = vector.extract_strided_slice %3 {offsets = [0, 2], sizes = [2, 1], strides = [1, 1]} : vector<2x8xf32> to vector<2x1xf32>
    %87 = vector.broadcast %86 : vector<2x1xf32> to vector<2x128xf32>
    %88 = vector.broadcast %0 : vector<1x128xf32> to vector<2x128xf32>
    %89 = arith.mulf %87, %88 : vector<2x128xf32>
    %90 = vector.broadcast %1 : vector<1x128xf32> to vector<2x128xf32>
    %91 = arith.addf %89, %90 : vector<2x128xf32>
    %92 = arith.truncf %85 : vector<2x32xf32> to vector<2x32xbf16>
    %cst_28 = arith.constant dense<0.000000e+00> : vector<2x128xf32>
    %93 = tpu.matmul %92, %2, %cst_28 {dimension_numbers = #tpu.dot_dimension_numbers<[1], [0], [0], [1], [0, 0, 1, 1], [], []>} : vector<2x32xbf16>, vector<32x128xbf16>, vector<2x128xf32> -> vector<2x128xf32>
    %94 = arith.addf %91, %93 : vector<2x128xf32>
    %95 = vector.extract_strided_slice %94 {offsets = [0, 0], sizes = [2, 32], strides = [1, 1]} : vector<2x128xf32> to vector<2x32xf32>
    %96 = math.tanh %95 : vector<2x32xf32>
    %97 = vector.extract_strided_slice %94 {offsets = [0, 32], sizes = [2, 32], strides = [1, 1]} : vector<2x128xf32> to vector<2x32xf32>
    %cst_29 = arith.constant 5.000000e-01 : f32
    %98 = vector.broadcast %cst_29 : f32 to vector<2x32xf32>
    %99 = arith.mulf %98, %97 : vector<2x32xf32>
    %100 = math.tanh %99 : vector<2x32xf32>
    %cst_30 = arith.constant 5.000000e-01 : f32
    %101 = vector.broadcast %cst_30 : f32 to vector<2x32xf32>
    %102 = arith.mulf %101, %100 : vector<2x32xf32>
    %cst_31 = arith.constant 5.000000e-01 : f32
    %103 = vector.broadcast %cst_31 : f32 to vector<2x32xf32>
    %104 = arith.addf %102, %103 : vector<2x32xf32>
    %105 = vector.extract_strided_slice %94 {offsets = [0, 64], sizes = [2, 32], strides = [1, 1]} : vector<2x128xf32> to vector<2x32xf32>
    %cst_32 = arith.constant 5.000000e-01 : f32
    %106 = vector.broadcast %cst_32 : f32 to vector<2x32xf32>
    %107 = arith.mulf %106, %105 : vector<2x32xf32>
    %108 = math.tanh %107 : vector<2x32xf32>
    %cst_33 = arith.constant 5.000000e-01 : f32
    %109 = vector.broadcast %cst_33 : f32 to vector<2x32xf32>
    %110 = arith.mulf %109, %108 : vector<2x32xf32>
    %cst_34 = arith.constant 5.000000e-01 : f32
    %111 = vector.broadcast %cst_34 : f32 to vector<2x32xf32>
    %112 = arith.addf %110, %111 : vector<2x32xf32>
    %113 = vector.extract_strided_slice %94 {offsets = [0, 96], sizes = [2, 32], strides = [1, 1]} : vector<2x128xf32> to vector<2x32xf32>
    %cst_35 = arith.constant 5.000000e-01 : f32
    %114 = vector.broadcast %cst_35 : f32 to vector<2x32xf32>
    %115 = arith.mulf %114, %113 : vector<2x32xf32>
    %116 = math.tanh %115 : vector<2x32xf32>
    %cst_36 = arith.constant 5.000000e-01 : f32
    %117 = vector.broadcast %cst_36 : f32 to vector<2x32xf32>
    %118 = arith.mulf %117, %116 : vector<2x32xf32>
    %cst_37 = arith.constant 5.000000e-01 : f32
    %119 = vector.broadcast %cst_37 : f32 to vector<2x32xf32>
    %120 = arith.addf %118, %119 : vector<2x32xf32>
    %121 = arith.mulf %96, %104 : vector<2x32xf32>
    %122 = arith.mulf %83, %112 : vector<2x32xf32>
    %123 = arith.addf %121, %122 : vector<2x32xf32>
    %124 = math.tanh %123 : vector<2x32xf32>
    %125 = arith.mulf %124, %120 : vector<2x32xf32>
    %126 = vector.extract_strided_slice %3 {offsets = [0, 3], sizes = [2, 1], strides = [1, 1]} : vector<2x8xf32> to vector<2x1xf32>
    %127 = vector.broadcast %126 : vector<2x1xf32> to vector<2x128xf32>
    %128 = vector.broadcast %0 : vector<1x128xf32> to vector<2x128xf32>
    %129 = arith.mulf %127, %128 : vector<2x128xf32>
    %130 = vector.broadcast %1 : vector<1x128xf32> to vector<2x128xf32>
    %131 = arith.addf %129, %130 : vector<2x128xf32>
    %132 = arith.truncf %125 : vector<2x32xf32> to vector<2x32xbf16>
    %cst_38 = arith.constant dense<0.000000e+00> : vector<2x128xf32>
    %133 = tpu.matmul %132, %2, %cst_38 {dimension_numbers = #tpu.dot_dimension_numbers<[1], [0], [0], [1], [0, 0, 1, 1], [], []>} : vector<2x32xbf16>, vector<32x128xbf16>, vector<2x128xf32> -> vector<2x128xf32>
    %134 = arith.addf %131, %133 : vector<2x128xf32>
    %135 = vector.extract_strided_slice %134 {offsets = [0, 0], sizes = [2, 32], strides = [1, 1]} : vector<2x128xf32> to vector<2x32xf32>
    %136 = math.tanh %135 : vector<2x32xf32>
    %137 = vector.extract_strided_slice %134 {offsets = [0, 32], sizes = [2, 32], strides = [1, 1]} : vector<2x128xf32> to vector<2x32xf32>
    %cst_39 = arith.constant 5.000000e-01 : f32
    %138 = vector.broadcast %cst_39 : f32 to vector<2x32xf32>
    %139 = arith.mulf %138, %137 : vector<2x32xf32>
    %140 = math.tanh %139 : vector<2x32xf32>
    %cst_40 = arith.constant 5.000000e-01 : f32
    %141 = vector.broadcast %cst_40 : f32 to vector<2x32xf32>
    %142 = arith.mulf %141, %140 : vector<2x32xf32>
    %cst_41 = arith.constant 5.000000e-01 : f32
    %143 = vector.broadcast %cst_41 : f32 to vector<2x32xf32>
    %144 = arith.addf %142, %143 : vector<2x32xf32>
    %145 = vector.extract_strided_slice %134 {offsets = [0, 64], sizes = [2, 32], strides = [1, 1]} : vector<2x128xf32> to vector<2x32xf32>
    %cst_42 = arith.constant 5.000000e-01 : f32
    %146 = vector.broadcast %cst_42 : f32 to vector<2x32xf32>
    %147 = arith.mulf %146, %145 : vector<2x32xf32>
    %148 = math.tanh %147 : vector<2x32xf32>
    %cst_43 = arith.constant 5.000000e-01 : f32
    %149 = vector.broadcast %cst_43 : f32 to vector<2x32xf32>
    %150 = arith.mulf %149, %148 : vector<2x32xf32>
    %cst_44 = arith.constant 5.000000e-01 : f32
    %151 = vector.broadcast %cst_44 : f32 to vector<2x32xf32>
    %152 = arith.addf %150, %151 : vector<2x32xf32>
    %153 = vector.extract_strided_slice %134 {offsets = [0, 96], sizes = [2, 32], strides = [1, 1]} : vector<2x128xf32> to vector<2x32xf32>
    %cst_45 = arith.constant 5.000000e-01 : f32
    %154 = vector.broadcast %cst_45 : f32 to vector<2x32xf32>
    %155 = arith.mulf %154, %153 : vector<2x32xf32>
    %156 = math.tanh %155 : vector<2x32xf32>
    %cst_46 = arith.constant 5.000000e-01 : f32
    %157 = vector.broadcast %cst_46 : f32 to vector<2x32xf32>
    %158 = arith.mulf %157, %156 : vector<2x32xf32>
    %cst_47 = arith.constant 5.000000e-01 : f32
    %159 = vector.broadcast %cst_47 : f32 to vector<2x32xf32>
    %160 = arith.addf %158, %159 : vector<2x32xf32>
    %161 = arith.mulf %136, %144 : vector<2x32xf32>
    %162 = arith.mulf %123, %152 : vector<2x32xf32>
    %163 = arith.addf %161, %162 : vector<2x32xf32>
    %164 = math.tanh %163 : vector<2x32xf32>
    %165 = arith.mulf %164, %160 : vector<2x32xf32>
    %166 = vector.extract_strided_slice %3 {offsets = [0, 4], sizes = [2, 1], strides = [1, 1]} : vector<2x8xf32> to vector<2x1xf32>
    %167 = vector.broadcast %166 : vector<2x1xf32> to vector<2x128xf32>
    %168 = vector.broadcast %0 : vector<1x128xf32> to vector<2x128xf32>
    %169 = arith.mulf %167, %168 : vector<2x128xf32>
    %170 = vector.broadcast %1 : vector<1x128xf32> to vector<2x128xf32>
    %171 = arith.addf %169, %170 : vector<2x128xf32>
    %172 = arith.truncf %165 : vector<2x32xf32> to vector<2x32xbf16>
    %cst_48 = arith.constant dense<0.000000e+00> : vector<2x128xf32>
    %173 = tpu.matmul %172, %2, %cst_48 {dimension_numbers = #tpu.dot_dimension_numbers<[1], [0], [0], [1], [0, 0, 1, 1], [], []>} : vector<2x32xbf16>, vector<32x128xbf16>, vector<2x128xf32> -> vector<2x128xf32>
    %174 = arith.addf %171, %173 : vector<2x128xf32>
    %175 = vector.extract_strided_slice %174 {offsets = [0, 0], sizes = [2, 32], strides = [1, 1]} : vector<2x128xf32> to vector<2x32xf32>
    %176 = math.tanh %175 : vector<2x32xf32>
    %177 = vector.extract_strided_slice %174 {offsets = [0, 32], sizes = [2, 32], strides = [1, 1]} : vector<2x128xf32> to vector<2x32xf32>
    %cst_49 = arith.constant 5.000000e-01 : f32
    %178 = vector.broadcast %cst_49 : f32 to vector<2x32xf32>
    %179 = arith.mulf %178, %177 : vector<2x32xf32>
    %180 = math.tanh %179 : vector<2x32xf32>
    %cst_50 = arith.constant 5.000000e-01 : f32
    %181 = vector.broadcast %cst_50 : f32 to vector<2x32xf32>
    %182 = arith.mulf %181, %180 : vector<2x32xf32>
    %cst_51 = arith.constant 5.000000e-01 : f32
    %183 = vector.broadcast %cst_51 : f32 to vector<2x32xf32>
    %184 = arith.addf %182, %183 : vector<2x32xf32>
    %185 = vector.extract_strided_slice %174 {offsets = [0, 64], sizes = [2, 32], strides = [1, 1]} : vector<2x128xf32> to vector<2x32xf32>
    %cst_52 = arith.constant 5.000000e-01 : f32
    %186 = vector.broadcast %cst_52 : f32 to vector<2x32xf32>
    %187 = arith.mulf %186, %185 : vector<2x32xf32>
    %188 = math.tanh %187 : vector<2x32xf32>
    %cst_53 = arith.constant 5.000000e-01 : f32
    %189 = vector.broadcast %cst_53 : f32 to vector<2x32xf32>
    %190 = arith.mulf %189, %188 : vector<2x32xf32>
    %cst_54 = arith.constant 5.000000e-01 : f32
    %191 = vector.broadcast %cst_54 : f32 to vector<2x32xf32>
    %192 = arith.addf %190, %191 : vector<2x32xf32>
    %193 = vector.extract_strided_slice %174 {offsets = [0, 96], sizes = [2, 32], strides = [1, 1]} : vector<2x128xf32> to vector<2x32xf32>
    %cst_55 = arith.constant 5.000000e-01 : f32
    %194 = vector.broadcast %cst_55 : f32 to vector<2x32xf32>
    %195 = arith.mulf %194, %193 : vector<2x32xf32>
    %196 = math.tanh %195 : vector<2x32xf32>
    %cst_56 = arith.constant 5.000000e-01 : f32
    %197 = vector.broadcast %cst_56 : f32 to vector<2x32xf32>
    %198 = arith.mulf %197, %196 : vector<2x32xf32>
    %cst_57 = arith.constant 5.000000e-01 : f32
    %199 = vector.broadcast %cst_57 : f32 to vector<2x32xf32>
    %200 = arith.addf %198, %199 : vector<2x32xf32>
    %201 = arith.mulf %176, %184 : vector<2x32xf32>
    %202 = arith.mulf %163, %192 : vector<2x32xf32>
    %203 = arith.addf %201, %202 : vector<2x32xf32>
    %204 = math.tanh %203 : vector<2x32xf32>
    %205 = arith.mulf %204, %200 : vector<2x32xf32>
    %206 = vector.extract_strided_slice %3 {offsets = [0, 5], sizes = [2, 1], strides = [1, 1]} : vector<2x8xf32> to vector<2x1xf32>
    %207 = vector.broadcast %206 : vector<2x1xf32> to vector<2x128xf32>
    %208 = vector.broadcast %0 : vector<1x128xf32> to vector<2x128xf32>
    %209 = arith.mulf %207, %208 : vector<2x128xf32>
    %210 = vector.broadcast %1 : vector<1x128xf32> to vector<2x128xf32>
    %211 = arith.addf %209, %210 : vector<2x128xf32>
    %212 = arith.truncf %205 : vector<2x32xf32> to vector<2x32xbf16>
    %cst_58 = arith.constant dense<0.000000e+00> : vector<2x128xf32>
    %213 = tpu.matmul %212, %2, %cst_58 {dimension_numbers = #tpu.dot_dimension_numbers<[1], [0], [0], [1], [0, 0, 1, 1], [], []>} : vector<2x32xbf16>, vector<32x128xbf16>, vector<2x128xf32> -> vector<2x128xf32>
    %214 = arith.addf %211, %213 : vector<2x128xf32>
    %215 = vector.extract_strided_slice %214 {offsets = [0, 0], sizes = [2, 32], strides = [1, 1]} : vector<2x128xf32> to vector<2x32xf32>
    %216 = math.tanh %215 : vector<2x32xf32>
    %217 = vector.extract_strided_slice %214 {offsets = [0, 32], sizes = [2, 32], strides = [1, 1]} : vector<2x128xf32> to vector<2x32xf32>
    %cst_59 = arith.constant 5.000000e-01 : f32
    %218 = vector.broadcast %cst_59 : f32 to vector<2x32xf32>
    %219 = arith.mulf %218, %217 : vector<2x32xf32>
    %220 = math.tanh %219 : vector<2x32xf32>
    %cst_60 = arith.constant 5.000000e-01 : f32
    %221 = vector.broadcast %cst_60 : f32 to vector<2x32xf32>
    %222 = arith.mulf %221, %220 : vector<2x32xf32>
    %cst_61 = arith.constant 5.000000e-01 : f32
    %223 = vector.broadcast %cst_61 : f32 to vector<2x32xf32>
    %224 = arith.addf %222, %223 : vector<2x32xf32>
    %225 = vector.extract_strided_slice %214 {offsets = [0, 64], sizes = [2, 32], strides = [1, 1]} : vector<2x128xf32> to vector<2x32xf32>
    %cst_62 = arith.constant 5.000000e-01 : f32
    %226 = vector.broadcast %cst_62 : f32 to vector<2x32xf32>
    %227 = arith.mulf %226, %225 : vector<2x32xf32>
    %228 = math.tanh %227 : vector<2x32xf32>
    %cst_63 = arith.constant 5.000000e-01 : f32
    %229 = vector.broadcast %cst_63 : f32 to vector<2x32xf32>
    %230 = arith.mulf %229, %228 : vector<2x32xf32>
    %cst_64 = arith.constant 5.000000e-01 : f32
    %231 = vector.broadcast %cst_64 : f32 to vector<2x32xf32>
    %232 = arith.addf %230, %231 : vector<2x32xf32>
    %233 = vector.extract_strided_slice %214 {offsets = [0, 96], sizes = [2, 32], strides = [1, 1]} : vector<2x128xf32> to vector<2x32xf32>
    %cst_65 = arith.constant 5.000000e-01 : f32
    %234 = vector.broadcast %cst_65 : f32 to vector<2x32xf32>
    %235 = arith.mulf %234, %233 : vector<2x32xf32>
    %236 = math.tanh %235 : vector<2x32xf32>
    %cst_66 = arith.constant 5.000000e-01 : f32
    %237 = vector.broadcast %cst_66 : f32 to vector<2x32xf32>
    %238 = arith.mulf %237, %236 : vector<2x32xf32>
    %cst_67 = arith.constant 5.000000e-01 : f32
    %239 = vector.broadcast %cst_67 : f32 to vector<2x32xf32>
    %240 = arith.addf %238, %239 : vector<2x32xf32>
    %241 = arith.mulf %216, %224 : vector<2x32xf32>
    %242 = arith.mulf %203, %232 : vector<2x32xf32>
    %243 = arith.addf %241, %242 : vector<2x32xf32>
    %244 = math.tanh %243 : vector<2x32xf32>
    %245 = arith.mulf %244, %240 : vector<2x32xf32>
    %246 = vector.extract_strided_slice %3 {offsets = [0, 6], sizes = [2, 1], strides = [1, 1]} : vector<2x8xf32> to vector<2x1xf32>
    %247 = vector.broadcast %246 : vector<2x1xf32> to vector<2x128xf32>
    %248 = vector.broadcast %0 : vector<1x128xf32> to vector<2x128xf32>
    %249 = arith.mulf %247, %248 : vector<2x128xf32>
    %250 = vector.broadcast %1 : vector<1x128xf32> to vector<2x128xf32>
    %251 = arith.addf %249, %250 : vector<2x128xf32>
    %252 = arith.truncf %245 : vector<2x32xf32> to vector<2x32xbf16>
    %cst_68 = arith.constant dense<0.000000e+00> : vector<2x128xf32>
    %253 = tpu.matmul %252, %2, %cst_68 {dimension_numbers = #tpu.dot_dimension_numbers<[1], [0], [0], [1], [0, 0, 1, 1], [], []>} : vector<2x32xbf16>, vector<32x128xbf16>, vector<2x128xf32> -> vector<2x128xf32>
    %254 = arith.addf %251, %253 : vector<2x128xf32>
    %255 = vector.extract_strided_slice %254 {offsets = [0, 0], sizes = [2, 32], strides = [1, 1]} : vector<2x128xf32> to vector<2x32xf32>
    %256 = math.tanh %255 : vector<2x32xf32>
    %257 = vector.extract_strided_slice %254 {offsets = [0, 32], sizes = [2, 32], strides = [1, 1]} : vector<2x128xf32> to vector<2x32xf32>
    %cst_69 = arith.constant 5.000000e-01 : f32
    %258 = vector.broadcast %cst_69 : f32 to vector<2x32xf32>
    %259 = arith.mulf %258, %257 : vector<2x32xf32>
    %260 = math.tanh %259 : vector<2x32xf32>
    %cst_70 = arith.constant 5.000000e-01 : f32
    %261 = vector.broadcast %cst_70 : f32 to vector<2x32xf32>
    %262 = arith.mulf %261, %260 : vector<2x32xf32>
    %cst_71 = arith.constant 5.000000e-01 : f32
    %263 = vector.broadcast %cst_71 : f32 to vector<2x32xf32>
    %264 = arith.addf %262, %263 : vector<2x32xf32>
    %265 = vector.extract_strided_slice %254 {offsets = [0, 64], sizes = [2, 32], strides = [1, 1]} : vector<2x128xf32> to vector<2x32xf32>
    %cst_72 = arith.constant 5.000000e-01 : f32
    %266 = vector.broadcast %cst_72 : f32 to vector<2x32xf32>
    %267 = arith.mulf %266, %265 : vector<2x32xf32>
    %268 = math.tanh %267 : vector<2x32xf32>
    %cst_73 = arith.constant 5.000000e-01 : f32
    %269 = vector.broadcast %cst_73 : f32 to vector<2x32xf32>
    %270 = arith.mulf %269, %268 : vector<2x32xf32>
    %cst_74 = arith.constant 5.000000e-01 : f32
    %271 = vector.broadcast %cst_74 : f32 to vector<2x32xf32>
    %272 = arith.addf %270, %271 : vector<2x32xf32>
    %273 = vector.extract_strided_slice %254 {offsets = [0, 96], sizes = [2, 32], strides = [1, 1]} : vector<2x128xf32> to vector<2x32xf32>
    %cst_75 = arith.constant 5.000000e-01 : f32
    %274 = vector.broadcast %cst_75 : f32 to vector<2x32xf32>
    %275 = arith.mulf %274, %273 : vector<2x32xf32>
    %276 = math.tanh %275 : vector<2x32xf32>
    %cst_76 = arith.constant 5.000000e-01 : f32
    %277 = vector.broadcast %cst_76 : f32 to vector<2x32xf32>
    %278 = arith.mulf %277, %276 : vector<2x32xf32>
    %cst_77 = arith.constant 5.000000e-01 : f32
    %279 = vector.broadcast %cst_77 : f32 to vector<2x32xf32>
    %280 = arith.addf %278, %279 : vector<2x32xf32>
    %281 = arith.mulf %256, %264 : vector<2x32xf32>
    %282 = arith.mulf %243, %272 : vector<2x32xf32>
    %283 = arith.addf %281, %282 : vector<2x32xf32>
    %284 = math.tanh %283 : vector<2x32xf32>
    %285 = arith.mulf %284, %280 : vector<2x32xf32>
    %286 = vector.extract_strided_slice %3 {offsets = [0, 7], sizes = [2, 1], strides = [1, 1]} : vector<2x8xf32> to vector<2x1xf32>
    %287 = vector.broadcast %286 : vector<2x1xf32> to vector<2x128xf32>
    %288 = vector.broadcast %0 : vector<1x128xf32> to vector<2x128xf32>
    %289 = arith.mulf %287, %288 : vector<2x128xf32>
    %290 = vector.broadcast %1 : vector<1x128xf32> to vector<2x128xf32>
    %291 = arith.addf %289, %290 : vector<2x128xf32>
    %292 = arith.truncf %285 : vector<2x32xf32> to vector<2x32xbf16>
    %cst_78 = arith.constant dense<0.000000e+00> : vector<2x128xf32>
    %293 = tpu.matmul %292, %2, %cst_78 {dimension_numbers = #tpu.dot_dimension_numbers<[1], [0], [0], [1], [0, 0, 1, 1], [], []>} : vector<2x32xbf16>, vector<32x128xbf16>, vector<2x128xf32> -> vector<2x128xf32>
    %294 = arith.addf %291, %293 : vector<2x128xf32>
    %295 = vector.extract_strided_slice %294 {offsets = [0, 0], sizes = [2, 32], strides = [1, 1]} : vector<2x128xf32> to vector<2x32xf32>
    %296 = math.tanh %295 : vector<2x32xf32>
    %297 = vector.extract_strided_slice %294 {offsets = [0, 32], sizes = [2, 32], strides = [1, 1]} : vector<2x128xf32> to vector<2x32xf32>
    %cst_79 = arith.constant 5.000000e-01 : f32
    %298 = vector.broadcast %cst_79 : f32 to vector<2x32xf32>
    %299 = arith.mulf %298, %297 : vector<2x32xf32>
    %300 = math.tanh %299 : vector<2x32xf32>
    %cst_80 = arith.constant 5.000000e-01 : f32
    %301 = vector.broadcast %cst_80 : f32 to vector<2x32xf32>
    %302 = arith.mulf %301, %300 : vector<2x32xf32>
    %cst_81 = arith.constant 5.000000e-01 : f32
    %303 = vector.broadcast %cst_81 : f32 to vector<2x32xf32>
    %304 = arith.addf %302, %303 : vector<2x32xf32>
    %305 = vector.extract_strided_slice %294 {offsets = [0, 64], sizes = [2, 32], strides = [1, 1]} : vector<2x128xf32> to vector<2x32xf32>
    %cst_82 = arith.constant 5.000000e-01 : f32
    %306 = vector.broadcast %cst_82 : f32 to vector<2x32xf32>
    %307 = arith.mulf %306, %305 : vector<2x32xf32>
    %308 = math.tanh %307 : vector<2x32xf32>
    %cst_83 = arith.constant 5.000000e-01 : f32
    %309 = vector.broadcast %cst_83 : f32 to vector<2x32xf32>
    %310 = arith.mulf %309, %308 : vector<2x32xf32>
    %cst_84 = arith.constant 5.000000e-01 : f32
    %311 = vector.broadcast %cst_84 : f32 to vector<2x32xf32>
    %312 = arith.addf %310, %311 : vector<2x32xf32>
    %313 = vector.extract_strided_slice %294 {offsets = [0, 96], sizes = [2, 32], strides = [1, 1]} : vector<2x128xf32> to vector<2x32xf32>
    %cst_85 = arith.constant 5.000000e-01 : f32
    %314 = vector.broadcast %cst_85 : f32 to vector<2x32xf32>
    %315 = arith.mulf %314, %313 : vector<2x32xf32>
    %316 = math.tanh %315 : vector<2x32xf32>
    %cst_86 = arith.constant 5.000000e-01 : f32
    %317 = vector.broadcast %cst_86 : f32 to vector<2x32xf32>
    %318 = arith.mulf %317, %316 : vector<2x32xf32>
    %cst_87 = arith.constant 5.000000e-01 : f32
    %319 = vector.broadcast %cst_87 : f32 to vector<2x32xf32>
    %320 = arith.addf %318, %319 : vector<2x32xf32>
    %321 = arith.mulf %296, %304 : vector<2x32xf32>
    %322 = arith.mulf %283, %312 : vector<2x32xf32>
    %323 = arith.addf %321, %322 : vector<2x32xf32>
    %324 = math.tanh %323 : vector<2x32xf32>
    %325 = arith.mulf %324, %320 : vector<2x32xf32>
    %326 = arith.truncf %325 : vector<2x32xf32> to vector<2x32xbf16>
    %c0_88 = arith.constant 0 : index
    %c0_89 = arith.constant 0 : index
    %327 = vector.load %arg5[%c0_88, %c0_89] : memref<32x10xbf16, #tpu.memory_space<vmem>>, vector<32x10xbf16>
    %cst_90 = arith.constant dense<0.000000e+00> : vector<2x10xf32>
    %328 = tpu.matmul %326, %327, %cst_90 {dimension_numbers = #tpu.dot_dimension_numbers<[1], [0], [0], [1], [0, 0, 1, 1], [], []>} : vector<2x32xbf16>, vector<32x10xbf16>, vector<2x10xf32> -> vector<2x10xf32>
    %c0_91 = arith.constant 0 : index
    %c0_92 = arith.constant 0 : index
    %329 = vector.load %arg6[%c0_91, %c0_92] : memref<1x10xf32, #tpu.memory_space<vmem>>, vector<1x10xf32>
    %330 = vector.broadcast %329 : vector<1x10xf32> to vector<2x10xf32>
    %331 = arith.addf %328, %330 : vector<2x10xf32>
    %c0_93 = arith.constant 0 : index
    %c0_94 = arith.constant 0 : index
    %332 = vector.load %arg7[%c0_93, %c0_94] : memref<2x10xf32, #tpu.memory_space<vmem>>, vector<2x10xf32>
    tpu.vector_store %arg7[%c0_93, %c0_94], %331 {strides = array<i32>} : memref<2x10xf32, #tpu.memory_space<vmem>>, vector<2x10xf32>,
    return
  }
  func.func @transform_0(%arg0: i32) -> (i32, i32) {
    %c0_i32 = arith.constant 0 : i32
    %c0_i32_0 = arith.constant 0 : i32
    %c0_i32_1 = arith.constant 0 : i32
    return %c0_i32, %c0_i32_0 : i32, i32
  }
  func.func @transform_1(%arg0: i32) -> (i32, i32) {
    %c0_i32 = arith.constant 0 : i32
    %c0_i32_0 = arith.constant 0 : i32
    %c0_i32_1 = arith.constant 0 : i32
    return %c0_i32, %c0_i32_0 : i32, i32
  }
  func.func @transform_2(%arg0: i32) -> (i32, i32) {
    %c0_i32 = arith.constant 0 : i32
    %c0_i32_0 = arith.constant 0 : i32
    %c0_i32_1 = arith.constant 0 : i32
    return %c0_i32, %c0_i32_0 : i32, i32
  }
  func.func @transform_3(%arg0: i32) -> (i32, i32) {
    %c0_i32 = arith.constant 0 : i32
    %c0_i32_0 = arith.constant 0 : i32
    %c0_i32_1 = arith.constant 0 : i32
    return %c0_i32, %c0_i32_0 : i32, i32
  }
  func.func @transform_4(%arg0: i32) -> (i32, i32) {
    %c0_i32 = arith.constant 0 : i32
    %c0_i32_0 = arith.constant 0 : i32
    %c0_i32_1 = arith.constant 0 : i32
    return %c0_i32, %c0_i32_0 : i32, i32
  }
  func.func @transform_5(%arg0: i32) -> (i32, i32) {
    %c0_i32 = arith.constant 0 : i32
    %c0_i32_0 = arith.constant 0 : i32
    %c0_i32_1 = arith.constant 0 : i32
    return %c0_i32, %c0_i32_0 : i32, i32
  }
  func.func @transform_6(%arg0: i32) -> (i32, i32) {
    %c0_i32 = arith.constant 0 : i32
    %c0_i32_0 = arith.constant 0 : i32
    %c0_i32_1 = arith.constant 0 : i32
    return %c0_i32, %c0_i32_0 : i32, i32
  }
}

</mosaic_0001>

<llo_original>
// kernel: lstm_forward.1
$region0: #{lstm_forward.1}
  #allocation0 [shape = 'u32[]', space=smem, size = 0x4, offset = 0x4, fixed_abs, tag = 'smem constant byte address 0x4 - core index']
  #allocation1 [shape = 'u32[144,128]{1,0:T(1,128)}', space=vmem, size = 0x12000, scoped, tag = 'internal scratch']
  %s0 = inlined_call_operand.vmem [shape: f32[2,8], index: 0, kind: input, shape index: {}]
  %s1 = inlined_call_operand.vmem [shape: f32[1,128], index: 1, kind: input, shape index: {}]
  %s2 = inlined_call_operand.vmem [shape: f32[1,128], index: 2, kind: input, shape index: {}]
  %s3 = inlined_call_operand.vmem [shape: bf16[32,128], index: 3, kind: input, shape index: {}]
  %s4 = inlined_call_operand.vmem [shape: bf16[32,10], index: 4, kind: input, shape index: {}]
  %s5 = inlined_call_operand.vmem [shape: f32[1,10], index: 5, kind: input, shape index: {}]
  %s6 = inlined_call_operand.hbm [shape: f32[2,10], index: 6, kind: output, shape index: {}]
  %s7 = sld [smem:[#allocation0]]
  $region34: #{lstm_forward.1} parent=0
    _
  %s9 = ssub.s32 1, %s7
  %s10 = scalar_select 0, %s9, %s7
  $region1: #{lstm_forward.1} parent=0
    #allocation2 [shape = 'u8[1024]{0}', space=vmem, size = 0x400, scoped, tag = 'output window, operand 0, single buffered']
    #allocation3 [shape = 's32[1]{0}', space=sflag, size = 0x4, scoped, tag = 'scoped memory for lstm_forward.1']
    %11 = vsyncpa [#allocation3], 0
    // Predicated region
    $region2: #{lstm_forward.1} parent=1 // pred_check
      _
    $region3: #{lstm_forward.1} parent=1 // pred_check_branch
      %13 = sbr.rel (0) target = $region5
    $region4: #{lstm_forward.1} parent=1 // pred_region
      _
    $region5: #{lstm_forward.1} parent=1 // pred_fallthru
      _
    // Predicated region
    $region6: #{lstm_forward.1} parent=1 // pred_check
      _
    $region7: #{lstm_forward.1} parent=1 // pred_check_branch
      %15 = sbr.rel (0) target = $region9
    $region8: #{lstm_forward.1} parent=1 // pred_region
      _
    $region9: #{lstm_forward.1} parent=1 // pred_fallthru
      _
    // Predicated region
    $region10: #{lstm_forward.1} parent=1 // pred_check
      _
    $region11: #{lstm_forward.1} parent=1 // pred_check_branch
      %17 = sbr.rel (0) target = $region13
    $region12: #{lstm_forward.1} parent=1 // pred_region
      _
    $region13: #{lstm_forward.1} parent=1 // pred_fallthru
      _
    // Predicated region
    $region14: #{lstm_forward.1} parent=1 // pred_check
      _
    $region15: #{lstm_forward.1} parent=1 // pred_check_branch
      %19 = sbr.rel (0) target = $region17
    $region16: #{lstm_forward.1} parent=1 // pred_region
      _
    $region17: #{lstm_forward.1} parent=1 // pred_fallthru
      _
    // Predicated region
    $region18: #{lstm_forward.1} parent=1 // pred_check
      _
    $region19: #{lstm_forward.1} parent=1 // pred_check_branch
      %21 = sbr.rel (0) target = $region21
    $region20: #{lstm_forward.1} parent=1 // pred_region
      _
    $region21: #{lstm_forward.1} parent=1 // pred_fallthru
      _
    // Predicated region
    $region22: #{lstm_forward.1} parent=1 // pred_check
      _
    $region23: #{lstm_forward.1} parent=1 // pred_check_branch
      %23 = sbr.rel (0) target = $region25
    $region24: #{lstm_forward.1} parent=1 // pred_region
      _
    $region25: #{lstm_forward.1} parent=1 // pred_fallthru
      _
    %v25 = vld [vmem:[%s1] sm:$0x1]
    %v26 = vld [vmem:[%s2] sm:$0x1]
    %v27 = vld [vmem:[%s3] sm:$0xf]
    %v28 = vld [vmem:[%s3 + $0x4] sm:$0xf]
    %v29 = vld [vmem:[%s3 + $0x8] sm:$0xf]
    %v30 = vld [vmem:[%s3 + $0xc] sm:$0xf]
    %v31 = vld [vmem:[%s0] sm:$0x3]
    %33 = vset.pattern.permute.xlu0 0
    %34 = vperm.xlu0 %33, %v31
    %v35 = vpop.permute.xlu0 %34
    %v38 = vlaneseq
    %v39 = vshrl.u32 %v38, 7
    %v40 = vsub.s32 0, %v39
    %v41 = vrot.slane %v25, %v40
    %v43 = vmul.f32 %v35, %v41
    %v45 = vlaneseq
    %v46 = vshrl.u32 %v45, 7
    %v47 = vsub.s32 0, %v46
    %v48 = vrot.slane %v26, %v47
    %v50 = vadd.f32 %v43, %v48
    %v55 = vunpack.c.l.b16 %v27
    %v56 = vunpack.c.l.b16 %v28
    %v57 = vunpack.c.l.b16 %v29
    %v58 = vunpack.c.l.b16 %v30
    %v59 = vpack.c.b16 %v56, %v55
    %v60 = vpack.c.b16 %v58, %v57
    %vm63 = vcmask 261120
    %v65 = vsel %vm63, 0, 0
    %67 = vmatprep.subr.bf16.mxu0 0
    %68 = vmatpush1.bf16.msra.mxu0 0
    %69 = vmatprep.subr.bf16.mxu0 0
    %70 = vmatpush1.bf16.msra.mxu0 0
    %71 = vmatprep.subr.bf16.mxu0 0
    %72 = vmatpush1.bf16.msra.mxu0 0
    %73 = vmatprep.subr.bf16.mxu0 0
    %74 = vmatpush1.bf16.msra.mxu0 0
    %75 = vmatprep.subr.bf16.mxu0 0
    %76 = vmatpush1.bf16.msra.mxu0 0
    %77 = vmatprep.subr.bf16.mxu0 0
    %78 = vmatpush1.bf16.msra.mxu0 0
    %79 = vmatprep.subr.bf16.mxu0 0
    %80 = vmatpush1.bf16.msra.mxu0 %v60
    %81 = vmatprep.subr.bf16.mxu0 0
    %82 = vmatpush1.bf16.msra.mxu0 %v59
    %83 = vmatprep.subr.bf16.mxu0 0
    %84 = vmatpush2.bf16.msra.mxu0 0
    %85 = vmatprep.subr.bf16.mxu0 0
    %86 = vmatpush2.bf16.msra.mxu0 0
    %87 = vmatprep.subr.bf16.mxu0 0
    %88 = vmatpush2.bf16.msra.mxu0 0
    %89 = vmatprep.subr.bf16.mxu0 0
    %90 = vmatpush2.bf16.msra.mxu0 0
    %91 = vmatprep.subr.bf16.mxu0 0
    %92 = vmatpush2.bf16.msra.mxu0 0
    %93 = vmatprep.subr.bf16.mxu0 0
    %94 = vmatpush2.bf16.msra.mxu0 0
    %95 = vmatprep.subr.bf16.mxu0 0
    %96 = vmatpush2.bf16.msra.mxu0 0
    %97 = vmatprep.subr.bf16.mxu0 0
    %98 = vmatpush2.bf16.msra.mxu0 0
    %99 = vmatprep.mubr.bf16.mxu0 0
    %100 = vmatmul.mubr.bf16.gmra.mxu0 %v65
    %v101 = vpop.f32.mrf.mxu0
    %v102 = vadd.f32 0.0, %v101
    %v103 = vpop.f32.mrf.mxu0
    %v104 = vpop.f32.mrf.mxu0
    %v105 = vpop.f32.mrf.mxu0
    %106 = vdwg.mxu0
    %v107 = vadd.f32 %v50, %v102
    %v108 = vtanh.pop %v107
    %v109 = vmul.f32 %v107, 0.5
    %v110 = vtanh.pop %v109
    %v111 = vmul.f32 %v110, 0.5
    %v112 = vadd.f32 %v111, 0.5
    %114 = vrot.lane.b32.xlu0 %v112, 96
    %v115 = vpop.permute.xlu0 %114
    %v117 = vmul.f32 %v108, %v115
    %v118 = vmul.f32 %v112, 0.0
    %120 = vrot.lane.b32.xlu0 %v118, 64
    %v121 = vpop.permute.xlu0 %120
    %v123 = vadd.f32 %v117, %v121
    %v124 = vtanh.pop %v123
    %125 = vrot.lane.b32.xlu0 %v112, 32
    %v126 = vpop.permute.xlu0 %125
    %v128 = vmul.f32 %v124, %v126
    %129 = vset.pattern.permute.xlu0 1
    %130 = vperm.xlu0 %129, %v31
    %v131 = vpop.permute.xlu0 %130
    %v133 = vmul.f32 %v131, %v41
    %v134 = vadd.f32 %v133, %v48
    %v135 = vpack.c.bf16 %v128, %v128
    %v137 = vsel %vm63, %v135, 0
    %139 = vmatprep.subr.bf16.mxu0 0
    %140 = vmatpush1.bf16.msra.mxu0 0
    %141 = vmatprep.subr.bf16.mxu0 0
    %142 = vmatpush1.bf16.msra.mxu0 0
    %143 = vmatprep.subr.bf16.mxu0 0
    %144 = vmatpush1.bf16.msra.mxu0 0
    %145 = vmatprep.subr.bf16.mxu0 0
    %146 = vmatpush1.bf16.msra.mxu0 0
    %147 = vmatprep.subr.bf16.mxu0 0
    %148 = vmatpush1.bf16.msra.mxu0 0
    %149 = vmatprep.subr.bf16.mxu0 0
    %150 = vmatpush1.bf16.msra.mxu0 0
    %151 = vmatprep.subr.bf16.mxu0 0
    %152 = vmatpush1.bf16.msra.mxu0 %v60
    %153 = vmatprep.subr.bf16.mxu0 0
    %154 = vmatpush1.bf16.msra.mxu0 %v59
    %155 = vmatprep.subr.bf16.mxu0 0
    %156 = vmatpush2.bf16.msra.mxu0 0
    %157 = vmatprep.subr.bf16.mxu0 0
    %158 = vmatpush2.bf16.msra.mxu0 0
    %159 = vmatprep.subr.bf16.mxu0 0
    %160 = vmatpush2.bf16.msra.mxu0 0
    %161 = vmatprep.subr.bf16.mxu0 0
    %162 = vmatpush2.bf16.msra.mxu0 0
    %163 = vmatprep.subr.bf16.mxu0 0
    %164 = vmatpush2.bf16.msra.mxu0 0
    %165 = vmatprep.subr.bf16.mxu0 0
    %166 = vmatpush2.bf16.msra.mxu0 0
    %167 = vmatprep.subr.bf16.mxu0 0
    %168 = vmatpush2.bf16.msra.mxu0 0
    %169 = vmatprep.subr.bf16.mxu0 0
    %170 = vmatpush2.bf16.msra.mxu0 0
    %171 = vmatprep.mubr.bf16.mxu0 0
    %172 = vmatmul.mubr.bf16.gmra.mxu0 %v137
    %v173 = vpop.f32.mrf.mxu0
    %v174 = vadd.f32 0.0, %v173
    %v175 = vpop.f32.mrf.mxu0
    %v176 = vpop.f32.mrf.mxu0
    %v177 = vpop.f32.mrf.mxu0
    %178 = vdwg.mxu0
    %v179 = vadd.f32 %v134, %v174
    %v180 = vtanh.pop %v179
    %v181 = vmul.f32 %v179, 0.5
    %v182 = vtanh.pop %v181
    %v183 = vmul.f32 %v182, 0.5
    %v184 = vadd.f32 %v183, 0.5
    %186 = vrot.lane.b32.xlu0 %v184, 96
    %v187 = vpop.permute.xlu0 %186
    %v189 = vmul.f32 %v180, %v187
    %190 = vrot.lane.b32.xlu0 %v184, 64
    %v191 = vpop.permute.xlu0 %190
    %v193 = vmul.f32 %v123, %v191
    %v194 = vadd.f32 %v189, %v193
    %v195 = vtanh.pop %v194
    %196 = vrot.lane.b32.xlu0 %v184, 32
    %v197 = vpop.permute.xlu0 %196
    %v199 = vmul.f32 %v195, %v197
    %200 = vset.pattern.permute.xlu0 2
    %201 = vperm.xlu0 %200, %v31
    %v202 = vpop.permute.xlu0 %201
    %v204 = vmul.f32 %v202, %v41
    %v205 = vadd.f32 %v204, %v48
    %v206 = vpack.c.bf16 %v199, %v199
    %v208 = vsel %vm63, %v206, 0
    %210 = vmatprep.subr.bf16.mxu0 0
    %211 = vmatpush1.bf16.msra.mxu0 0
    %212 = vmatprep.subr.bf16.mxu0 0
    %213 = vmatpush1.bf16.msra.mxu0 0
    %214 = vmatprep.subr.bf16.mxu0 0
    %215 = vmatpush1.bf16.msra.mxu0 0
    %216 = vmatprep.subr.bf16.mxu0 0
    %217 = vmatpush1.bf16.msra.mxu0 0
    %218 = vmatprep.subr.bf16.mxu0 0
    %219 = vmatpush1.bf16.msra.mxu0 0
    %220 = vmatprep.subr.bf16.mxu0 0
    %221 = vmatpush1.bf16.msra.mxu0 0
    %222 = vmatprep.subr.bf16.mxu0 0
    %223 = vmatpush1.bf16.msra.mxu0 %v60
    %224 = vmatprep.subr.bf16.mxu0 0
    %225 = vmatpush1.bf16.msra.mxu0 %v59
    %226 = vmatprep.subr.bf16.mxu0 0
    %227 = vmatpush2.bf16.msra.mxu0 0
    %228 = vmatprep.subr.bf16.mxu0 0
    %229 = vmatpush2.bf16.msra.mxu0 0
    %230 = vmatprep.subr.bf16.mxu0 0
    %231 = vmatpush2.bf16.msra.mxu0 0
    %232 = vmatprep.subr.bf16.mxu0 0
    %233 = vmatpush2.bf16.msra.mxu0 0
    %234 = vmatprep.subr.bf16.mxu0 0
    %235 = vmatpush2.bf16.msra.mxu0 0
    %236 = vmatprep.subr.bf16.mxu0 0
    %237 = vmatpush2.bf16.msra.mxu0 0
    %238 = vmatprep.subr.bf16.mxu0 0
    %239 = vmatpush2.bf16.msra.mxu0 0
    %240 = vmatprep.subr.bf16.mxu0 0
    %241 = vmatpush2.bf16.msra.mxu0 0
    %242 = vmatprep.mubr.bf16.mxu0 0
    %243 = vmatmul.mubr.bf16.gmra.mxu0 %v208
    %v244 = vpop.f32.mrf.mxu0
    %v245 = vadd.f32 0.0, %v244
    %v246 = vpop.f32.mrf.mxu0
    %v247 = vpop.f32.mrf.mxu0
    %v248 = vpop.f32.mrf.mxu0
    %249 = vdwg.mxu0
    %v250 = vadd.f32 %v205, %v245
    %v251 = vtanh.pop %v250
    %v252 = vmul.f32 %v250, 0.5
    %v253 = vtanh.pop %v252
    %v254 = vmul.f32 %v253, 0.5
    %v255 = vadd.f32 %v254, 0.5
    %257 = vrot.lane.b32.xlu0 %v255, 96
    %v258 = vpop.permute.xlu0 %257
    %v260 = vmul.f32 %v251, %v258
    %261 = vrot.lane.b32.xlu0 %v255, 64
    %v262 = vpop.permute.xlu0 %261
    %v264 = vmul.f32 %v194, %v262
    %v265 = vadd.f32 %v260, %v264
    %v266 = vtanh.pop %v265
    %267 = vrot.lane.b32.xlu0 %v255, 32
    %v268 = vpop.permute.xlu0 %267
    %v270 = vmul.f32 %v266, %v268
    %271 = vset.pattern.permute.xlu0 3
    %272 = vperm.xlu0 %271, %v31
    %v273 = vpop.permute.xlu0 %272
    %v275 = vmul.f32 %v273, %v41
    %v276 = vadd.f32 %v275, %v48
    %v277 = vpack.c.bf16 %v270, %v270
    %v279 = vsel %vm63, %v277, 0
    %281 = vmatprep.subr.bf16.mxu0 0
    %282 = vmatpush1.bf16.msra.mxu0 0
    %283 = vmatprep.subr.bf16.mxu0 0
    %284 = vmatpush1.bf16.msra.mxu0 0
    %285 = vmatprep.subr.bf16.mxu0 0
    %286 = vmatpush1.bf16.msra.mxu0 0
    %287 = vmatprep.subr.bf16.mxu0 0
    %288 = vmatpush1.bf16.msra.mxu0 0
    %289 = vmatprep.subr.bf16.mxu0 0
    %290 = vmatpush1.bf16.msra.mxu0 0
    %291 = vmatprep.subr.bf16.mxu0 0
    %292 = vmatpush1.bf16.msra.mxu0 0
    %293 = vmatprep.subr.bf16.mxu0 0
    %294 = vmatpush1.bf16.msra.mxu0 %v60
    %295 = vmatprep.subr.bf16.mxu0 0
    %296 = vmatpush1.bf16.msra.mxu0 %v59
    %297 = vmatprep.subr.bf16.mxu0 0
    %298 = vmatpush2.bf16.msra.mxu0 0
    %299 = vmatprep.subr.bf16.mxu0 0
    %300 = vmatpush2.bf16.msra.mxu0 0
    %301 = vmatprep.subr.bf16.mxu0 0
    %302 = vmatpush2.bf16.msra.mxu0 0
    %303 = vmatprep.subr.bf16.mxu0 0
    %304 = vmatpush2.bf16.msra.mxu0 0
    %305 = vmatprep.subr.bf16.mxu0 0
    %306 = vmatpush2.bf16.msra.mxu0 0
    %307 = vmatprep.subr.bf16.mxu0 0
    %308 = vmatpush2.bf16.msra.mxu0 0
    %309 = vmatprep.subr.bf16.mxu0 0
    %310 = vmatpush2.bf16.msra.mxu0 0
    %311 = vmatprep.subr.bf16.mxu0 0
    %312 = vmatpush2.bf16.msra.mxu0 0
    %313 = vmatprep.mubr.bf16.mxu0 0
    %314 = vmatmul.mubr.bf16.gmra.mxu0 %v279
    %v315 = vpop.f32.mrf.mxu0
    %v316 = vadd.f32 0.0, %v315
    %v317 = vpop.f32.mrf.mxu0
    %v318 = vpop.f32.mrf.mxu0
    %v319 = vpop.f32.mrf.mxu0
    %320 = vdwg.mxu0
    %v321 = vadd.f32 %v276, %v316
    %v322 = vtanh.pop %v321
    %v323 = vmul.f32 %v321, 0.5
    %v324 = vtanh.pop %v323
    %v325 = vmul.f32 %v324, 0.5
    %v326 = vadd.f32 %v325, 0.5
    %328 = vrot.lane.b32.xlu0 %v326, 96
    %v329 = vpop.permute.xlu0 %328
    %v331 = vmul.f32 %v322, %v329
    %332 = vrot.lane.b32.xlu0 %v326, 64
    %v333 = vpop.permute.xlu0 %332
    %v335 = vmul.f32 %v265, %v333
    %v336 = vadd.f32 %v331, %v335
    %v337 = vtanh.pop %v336
    %338 = vrot.lane.b32.xlu0 %v326, 32
    %v339 = vpop.permute.xlu0 %338
    %v341 = vmul.f32 %v337, %v339
    %342 = vset.pattern.permute.xlu0 4
    %343 = vperm.xlu0 %342, %v31
    %v344 = vpop.permute.xlu0 %343
    %v346 = vmul.f32 %v344, %v41
    %v347 = vadd.f32 %v346, %v48
    %v348 = vpack.c.bf16 %v341, %v341
    %v350 = vsel %vm63, %v348, 0
    %352 = vmatprep.subr.bf16.mxu0 0
    %353 = vmatpush1.bf16.msra.mxu0 0
    %354 = vmatprep.subr.bf16.mxu0 0
    %355 = vmatpush1.bf16.msra.mxu0 0
    %356 = vmatprep.subr.bf16.mxu0 0
    %357 = vmatpush1.bf16.msra.mxu0 0
    %358 = vmatprep.subr.bf16.mxu0 0
    %359 = vmatpush1.bf16.msra.mxu0 0
    %360 = vmatprep.subr.bf16.mxu0 0
    %361 = vmatpush1.bf16.msra.mxu0 0
    %362 = vmatprep.subr.bf16.mxu0 0
    %363 = vmatpush1.bf16.msra.mxu0 0
    %364 = vmatprep.subr.bf16.mxu0 0
    %365 = vmatpush1.bf16.msra.mxu0 %v60
    %366 = vmatprep.subr.bf16.mxu0 0
    %367 = vmatpush1.bf16.msra.mxu0 %v59
    %368 = vmatprep.subr.bf16.mxu0 0
    %369 = vmatpush2.bf16.msra.mxu0 0
    %370 = vmatprep.subr.bf16.mxu0 0
    %371 = vmatpush2.bf16.msra.mxu0 0
    %372 = vmatprep.subr.bf16.mxu0 0
    %373 = vmatpush2.bf16.msra.mxu0 0
    %374 = vmatprep.subr.bf16.mxu0 0
    %375 = vmatpush2.bf16.msra.mxu0 0
    %376 = vmatprep.subr.bf16.mxu0 0
    %377 = vmatpush2.bf16.msra.mxu0 0
    %378 = vmatprep.subr.bf16.mxu0 0
    %379 = vmatpush2.bf16.msra.mxu0 0
    %380 = vmatprep.subr.bf16.mxu0 0
    %381 = vmatpush2.bf16.msra.mxu0 0
    %382 = vmatprep.subr.bf16.mxu0 0
    %383 = vmatpush2.bf16.msra.mxu0 0
    %384 = vmatprep.mubr.bf16.mxu0 0
    %385 = vmatmul.mubr.bf16.gmra.mxu0 %v350
    %v386 = vpop.f32.mrf.mxu0
    %v387 = vadd.f32 0.0, %v386
    %v388 = vpop.f32.mrf.mxu0
    %v389 = vpop.f32.mrf.mxu0
    %v390 = vpop.f32.mrf.mxu0
    %391 = vdwg.mxu0
    %v392 = vadd.f32 %v347, %v387
    %v393 = vtanh.pop %v392
    %v394 = vmul.f32 %v392, 0.5
    %v395 = vtanh.pop %v394
    %v396 = vmul.f32 %v395, 0.5
    %v397 = vadd.f32 %v396, 0.5
    %399 = vrot.lane.b32.xlu0 %v397, 96
    %v400 = vpop.permute.xlu0 %399
    %v402 = vmul.f32 %v393, %v400
    %403 = vrot.lane.b32.xlu0 %v397, 64
    %v404 = vpop.permute.xlu0 %403
    %v406 = vmul.f32 %v336, %v404
    %v407 = vadd.f32 %v402, %v406
    %v408 = vtanh.pop %v407
    %409 = vrot.lane.b32.xlu0 %v397, 32
    %v410 = vpop.permute.xlu0 %409
    %v412 = vmul.f32 %v408, %v410
    %413 = vset.pattern.permute.xlu0 5
    %414 = vperm.xlu0 %413, %v31
    %v415 = vpop.permute.xlu0 %414
    %v417 = vmul.f32 %v415, %v41
    %v418 = vadd.f32 %v417, %v48
    %v419 = vpack.c.bf16 %v412, %v412
    %v421 = vsel %vm63, %v419, 0
    %423 = vmatprep.subr.bf16.mxu0 0
    %424 = vmatpush1.bf16.msra.mxu0 0
    %425 = vmatprep.subr.bf16.mxu0 0
    %426 = vmatpush1.bf16.msra.mxu0 0
    %427 = vmatprep.subr.bf16.mxu0 0
    %428 = vmatpush1.bf16.msra.mxu0 0
    %429 = vmatprep.subr.bf16.mxu0 0
    %430 = vmatpush1.bf16.msra.mxu0 0
    %431 = vmatprep.subr.bf16.mxu0 0
    %432 = vmatpush1.bf16.msra.mxu0 0
    %433 = vmatprep.subr.bf16.mxu0 0
    %434 = vmatpush1.bf16.msra.mxu0 0
    %435 = vmatprep.subr.bf16.mxu0 0
    %436 = vmatpush1.bf16.msra.mxu0 %v60
    %437 = vmatprep.subr.bf16.mxu0 0
    %438 = vmatpush1.bf16.msra.mxu0 %v59
    %439 = vmatprep.subr.bf16.mxu0 0
    %440 = vmatpush2.bf16.msra.mxu0 0
    %441 = vmatprep.subr.bf16.mxu0 0
    %442 = vmatpush2.bf16.msra.mxu0 0
    %443 = vmatprep.subr.bf16.mxu0 0
    %444 = vmatpush2.bf16.msra.mxu0 0
    %445 = vmatprep.subr.bf16.mxu0 0
    %446 = vmatpush2.bf16.msra.mxu0 0
    %447 = vmatprep.subr.bf16.mxu0 0
    %448 = vmatpush2.bf16.msra.mxu0 0
    %449 = vmatprep.subr.bf16.mxu0 0
    %450 = vmatpush2.bf16.msra.mxu0 0
    %451 = vmatprep.subr.bf16.mxu0 0
    %452 = vmatpush2.bf16.msra.mxu0 0
    %453 = vmatprep.subr.bf16.mxu0 0
    %454 = vmatpush2.bf16.msra.mxu0 0
    %455 = vmatprep.mubr.bf16.mxu0 0
    %456 = vmatmul.mubr.bf16.gmra.mxu0 %v421
    %v457 = vpop.f32.mrf.mxu0
    %v458 = vadd.f32 0.0, %v457
    %v459 = vpop.f32.mrf.mxu0
    %v460 = vpop.f32.mrf.mxu0
    %v461 = vpop.f32.mrf.mxu0
    %462 = vdwg.mxu0
    %v463 = vadd.f32 %v418, %v458
    %v464 = vtanh.pop %v463
    %v465 = vmul.f32 %v463, 0.5
    %v466 = vtanh.pop %v465
    %v467 = vmul.f32 %v466, 0.5
    %v468 = vadd.f32 %v467, 0.5
    %470 = vrot.lane.b32.xlu0 %v468, 96
    %v471 = vpop.permute.xlu0 %470
    %v473 = vmul.f32 %v464, %v471
    %474 = vrot.lane.b32.xlu0 %v468, 64
    %v475 = vpop.permute.xlu0 %474
    %v477 = vmul.f32 %v407, %v475
    %v478 = vadd.f32 %v473, %v477
    %v479 = vtanh.pop %v478
    %480 = vrot.lane.b32.xlu0 %v468, 32
    %v481 = vpop.permute.xlu0 %480
    %v483 = vmul.f32 %v479, %v481
    %484 = vset.pattern.permute.xlu0 6
    %485 = vperm.xlu0 %484, %v31
    %v486 = vpop.permute.xlu0 %485
    %v488 = vmul.f32 %v486, %v41
    %v489 = vadd.f32 %v488, %v48
    %v490 = vpack.c.bf16 %v483, %v483
    %v492 = vsel %vm63, %v490, 0
    %494 = vmatprep.subr.bf16.mxu0 0
    %495 = vmatpush1.bf16.msra.mxu0 0
    %496 = vmatprep.subr.bf16.mxu0 0
    %497 = vmatpush1.bf16.msra.mxu0 0
    %498 = vmatprep.subr.bf16.mxu0 0
    %499 = vmatpush1.bf16.msra.mxu0 0
    %500 = vmatprep.subr.bf16.mxu0 0
    %501 = vmatpush1.bf16.msra.mxu0 0
    %502 = vmatprep.subr.bf16.mxu0 0
    %503 = vmatpush1.bf16.msra.mxu0 0
    %504 = vmatprep.subr.bf16.mxu0 0
    %505 = vmatpush1.bf16.msra.mxu0 0
    %506 = vmatprep.subr.bf16.mxu0 0
    %507 = vmatpush1.bf16.msra.mxu0 %v60
    %508 = vmatprep.subr.bf16.mxu0 0
    %509 = vmatpush1.bf16.msra.mxu0 %v59
    %510 = vmatprep.subr.bf16.mxu0 0
    %511 = vmatpush2.bf16.msra.mxu0 0
    %512 = vmatprep.subr.bf16.mxu0 0
    %513 = vmatpush2.bf16.msra.mxu0 0
    %514 = vmatprep.subr.bf16.mxu0 0
    %515 = vmatpush2.bf16.msra.mxu0 0
    %516 = vmatprep.subr.bf16.mxu0 0
    %517 = vmatpush2.bf16.msra.mxu0 0
    %518 = vmatprep.subr.bf16.mxu0 0
    %519 = vmatpush2.bf16.msra.mxu0 0
    %520 = vmatprep.subr.bf16.mxu0 0
    %521 = vmatpush2.bf16.msra.mxu0 0
    %522 = vmatprep.subr.bf16.mxu0 0
    %523 = vmatpush2.bf16.msra.mxu0 0
    %524 = vmatprep.subr.bf16.mxu0 0
    %525 = vmatpush2.bf16.msra.mxu0 0
    %526 = vmatprep.mubr.bf16.mxu0 0
    %527 = vmatmul.mubr.bf16.gmra.mxu0 %v492
    %v528 = vpop.f32.mrf.mxu0
    %v529 = vadd.f32 0.0, %v528
    %v530 = vpop.f32.mrf.mxu0
    %v531 = vpop.f32.mrf.mxu0
    %v532 = vpop.f32.mrf.mxu0
    %533 = vdwg.mxu0
    %v534 = vadd.f32 %v489, %v529
    %v535 = vtanh.pop %v534
    %v536 = vmul.f32 %v534, 0.5
    %v537 = vtanh.pop %v536
    %v538 = vmul.f32 %v537, 0.5
    %v539 = vadd.f32 %v538, 0.5
    %541 = vrot.lane.b32.xlu0 %v539, 96
    %v542 = vpop.permute.xlu0 %541
    %v544 = vmul.f32 %v535, %v542
    %545 = vrot.lane.b32.xlu0 %v539, 64
    %v546 = vpop.permute.xlu0 %545
    %v548 = vmul.f32 %v478, %v546
    %v549 = vadd.f32 %v544, %v548
    %v550 = vtanh.pop %v549
    %551 = vrot.lane.b32.xlu0 %v539, 32
    %v552 = vpop.permute.xlu0 %551
    %v554 = vmul.f32 %v550, %v552
    %555 = vset.pattern.permute.xlu0 7
    %556 = vperm.xlu0 %555, %v31
    %v557 = vpop.permute.xlu0 %556
    %v559 = vmul.f32 %v557, %v41
    %v560 = vadd.f32 %v559, %v48
    %v561 = vpack.c.bf16 %v554, %v554
    %v563 = vsel %vm63, %v561, 0
    %565 = vmatprep.subr.bf16.mxu0 0
    %566 = vmatpush1.bf16.msra.mxu0 0
    %567 = vmatprep.subr.bf16.mxu0 0
    %568 = vmatpush1.bf16.msra.mxu0 0
    %569 = vmatprep.subr.bf16.mxu0 0
    %570 = vmatpush1.bf16.msra.mxu0 0
    %571 = vmatprep.subr.bf16.mxu0 0
    %572 = vmatpush1.bf16.msra.mxu0 0
    %573 = vmatprep.subr.bf16.mxu0 0
    %574 = vmatpush1.bf16.msra.mxu0 0
    %575 = vmatprep.subr.bf16.mxu0 0
    %576 = vmatpush1.bf16.msra.mxu0 0
    %577 = vmatprep.subr.bf16.mxu0 0
    %578 = vmatpush1.bf16.msra.mxu0 %v60
    %579 = vmatprep.subr.bf16.mxu0 0
    %580 = vmatpush1.bf16.msra.mxu0 %v59
    %581 = vmatprep.subr.bf16.mxu0 0
    %582 = vmatpush2.bf16.msra.mxu0 0
    %583 = vmatprep.subr.bf16.mxu0 0
    %584 = vmatpush2.bf16.msra.mxu0 0
    %585 = vmatprep.subr.bf16.mxu0 0
    %586 = vmatpush2.bf16.msra.mxu0 0
    %587 = vmatprep.subr.bf16.mxu0 0
    %588 = vmatpush2.bf16.msra.mxu0 0
    %589 = vmatprep.subr.bf16.mxu0 0
    %590 = vmatpush2.bf16.msra.mxu0 0
    %591 = vmatprep.subr.bf16.mxu0 0
    %592 = vmatpush2.bf16.msra.mxu0 0
    %593 = vmatprep.subr.bf16.mxu0 0
    %594 = vmatpush2.bf16.msra.mxu0 0
    %595 = vmatprep.subr.bf16.mxu0 0
    %596 = vmatpush2.bf16.msra.mxu0 0
    %597 = vmatprep.mubr.bf16.mxu0 0
    %598 = vmatmul.mubr.bf16.gmra.mxu0 %v563
    %v599 = vpop.f32.mrf.mxu0
    %v600 = vadd.f32 0.0, %v599
    %v601 = vpop.f32.mrf.mxu0
    %v602 = vpop.f32.mrf.mxu0
    %v603 = vpop.f32.mrf.mxu0
    %604 = vdwg.mxu0
    %v605 = vadd.f32 %v560, %v600
    %v606 = vtanh.pop %v605
    %v607 = vmul.f32 %v605, 0.5
    %v608 = vtanh.pop %v607
    %v609 = vmul.f32 %v608, 0.5
    %v610 = vadd.f32 %v609, 0.5
    %612 = vrot.lane.b32.xlu0 %v610, 96
    %v613 = vpop.permute.xlu0 %612
    %v615 = vmul.f32 %v606, %v613
    %616 = vrot.lane.b32.xlu0 %v610, 64
    %v617 = vpop.permute.xlu0 %616
    %v619 = vmul.f32 %v549, %v617
    %v620 = vadd.f32 %v615, %v619
    %v621 = vtanh.pop %v620
    %622 = vrot.lane.b32.xlu0 %v610, 32
    %v623 = vpop.permute.xlu0 %622
    %v625 = vmul.f32 %v621, %v623
    %v626 = vpack.c.bf16 %v625, %v625
    %v627 = vld [vmem:[%s4] sm:$0xf]
    %v628 = vld [vmem:[%s4 + $0x4] sm:$0xf]
    %v629 = vld [vmem:[%s4 + $0x8] sm:$0xf]
    %v630 = vld [vmem:[%s4 + $0xc] sm:$0xf]
    %v631 = vld [vmem:[%s5] sm:$0x1]
    %v633 = vlaneseq
    %v634 = vshrl.u32 %v633, 7
    %v635 = vsub.s32 0, %v634
    %v636 = vrot.slane %v631, %v635
    %v642 = vunpack.c.l.b16 %v627
    %v643 = vunpack.c.l.b16 %v628
    %v644 = vunpack.c.l.b16 %v629
    %v645 = vunpack.c.l.b16 %v630
    %v646 = vpack.c.b16 %v643, %v642
    %v647 = vpack.c.b16 %v645, %v644
    %v651 = vsel %vm63, %v626, 0
    %653 = vmatprep.subr.bf16.mxu0 0
    %654 = vmatpush1.bf16.msra.mxu0 0
    %655 = vmatprep.subr.bf16.mxu0 0
    %656 = vmatpush1.bf16.msra.mxu0 0
    %657 = vmatprep.subr.bf16.mxu0 0
    %658 = vmatpush1.bf16.msra.mxu0 0
    %659 = vmatprep.subr.bf16.mxu0 0
    %660 = vmatpush1.bf16.msra.mxu0 0
    %661 = vmatprep.subr.bf16.mxu0 0
    %662 = vmatpush1.bf16.msra.mxu0 0
    %663 = vmatprep.subr.bf16.mxu0 0
    %664 = vmatpush1.bf16.msra.mxu0 0
    %665 = vmatprep.subr.bf16.mxu0 0
    %666 = vmatpush1.bf16.msra.mxu0 %v647
    %667 = vmatprep.subr.bf16.mxu0 0
    %668 = vmatpush1.bf16.msra.mxu0 %v646
    %669 = vmatprep.subr.bf16.mxu0 0
    %670 = vmatpush2.bf16.msra.mxu0 0
    %671 = vmatprep.subr.bf16.mxu0 0
    %672 = vmatpush2.bf16.msra.mxu0 0
    %673 = vmatprep.subr.bf16.mxu0 0
    %674 = vmatpush2.bf16.msra.mxu0 0
    %675 = vmatprep.subr.bf16.mxu0 0
    %676 = vmatpush2.bf16.msra.mxu0 0
    %677 = vmatprep.subr.bf16.mxu0 0
    %678 = vmatpush2.bf16.msra.mxu0 0
    %679 = vmatprep.subr.bf16.mxu0 0
    %680 = vmatpush2.bf16.msra.mxu0 0
    %681 = vmatprep.subr.bf16.mxu0 0
    %682 = vmatpush2.bf16.msra.mxu0 0
    %683 = vmatprep.subr.bf16.mxu0 0
    %684 = vmatpush2.bf16.msra.mxu0 0
    %685 = vmatprep.mubr.bf16.mxu0 0
    %686 = vmatmul.mubr.bf16.gmra.mxu0 %v651
    %v687 = vpop.f32.mrf.mxu0
    %v688 = vadd.f32 %v636, %v687
    %v689 = vpop.f32.mrf.mxu0
    %v690 = vpop.f32.mrf.mxu0
    %v691 = vpop.f32.mrf.mxu0
    %692 = vdwg.mxu0
    %vm693 = vcmask 74752
    %694 = vst.msk [vmem:[#allocation2] sm:$0x3] %vm693, %v688
    // Predicated region
    $region26: #{lstm_forward.1} parent=1 // pred_check
      _
    $region27: #{lstm_forward.1} parent=1 // pred_check_branch
      %696 = sbr.rel (0) target = $region29
    $region28: #{lstm_forward.1} parent=1 // pred_region
      %s698 = ssub.s32 32, 32
      %699 = vsyncadd [#allocation3], %s698
      %s701 = sshll.u32 [#allocation2], 4
      %s702 = int_to_ptr.vmem [resolvable:$true] %s701
      %704 = dma.vmem_to_hbm [thread:$0]  %s702, 32, %s6, [#allocation3]
    $region29: #{lstm_forward.1} parent=1 // pred_fallthru
      _
    // Predicated region
    $region30: #{lstm_forward.1} parent=1 // pred_check
      _
    $region31: #{lstm_forward.1} parent=1 // pred_check_branch
      %706 = sbr.rel (0) target = $region33
    $region32: #{lstm_forward.1} parent=1 // pred_region
      %707 = dma.done [#allocation3], 32
    $region33: #{lstm_forward.1} parent=1 // pred_fallthru
      _
    %708 = vsyncpa [#allocation3], 1

</llo_original>
